<compile_context>
chip_gen: v7x
topology: tpu7x:2x2x1
jax: 0.10.0
libtpu: 0.0.40
codegen_flags: <defaults>
</compile_context>

<pallas_src>
import jax
import jax.numpy as jnp
from jax.experimental import pallas as pl
from jax.experimental.pallas import tpu as pltpu

IN_FEATURES = 42
OUT_FEATURES = 26
# ~2.75 MiB x-tile + ~1.7 MiB out-tile per pipeline buffer at f32.
_DEFAULT_TB = 16384


def _round_up(x, m):
    return ((x + m - 1) // m) * m


def _linear_kernel(x_ref, w_ref, b_ref, o_ref):
    # MXU matmul of the (TB, 42) x (42, 26) tiles, f32 accumulate, bias add.
    x = x_ref[...]                       # (TB, 42)   f32 or bf16
    w = w_ref[...]                       # (42, 26)   same dtype as x
    b = b_ref[...]                       # (1, 26)    f32
    acc = jnp.dot(x, w, preferred_element_type=jnp.float32)  # (TB, 26) f32
    o_ref[...] = (acc + b).astype(o_ref.dtype)


def sign_language_model_forward(x, w_t, bias, *, tb=_DEFAULT_TB):
    """x: (B, 42), w_t: (42, 26) (= W transposed), bias: (26,). Returns (B, 26)."""
    B = x.shape[0]
    out_dtype = x.dtype

    w_t = w_t.astype(x.dtype)                                   # tiny, one-off
    bias2d = bias.astype(jnp.float32).reshape(1, OUT_FEATURES)  # tiny, one-off

    # Tile size: multiple of 8 (sublane), capped at tb.  Small batches collapse
    # to a single pad-free grid step.
    TB = min(tb, _round_up(B, 8))
    B_pad = _round_up(B, TB)
    if B_pad != B:
        x = jnp.pad(x, ((0, B_pad - B), (0, 0)))
    grid = (B_pad // TB,)

    out = pl.pallas_call(
        _linear_kernel,
        out_shape=jax.ShapeDtypeStruct((B_pad, OUT_FEATURES), out_dtype),
        grid=grid,
        in_specs=[
            # x: tiled along batch -> auto double-buffered DMA per grid step.
            pl.BlockSpec((TB, IN_FEATURES), lambda i: (i, 0)),
            # W / bias: constant index_map -> DMA'd once, resident in VMEM.
            pl.BlockSpec((IN_FEATURES, OUT_FEATURES), lambda i: (0, 0)),
            pl.BlockSpec((1, OUT_FEATURES), lambda i: (0, 0)),
        ],
        out_specs=pl.BlockSpec((TB, OUT_FEATURES), lambda i: (i, 0)),
        compiler_params=pltpu.CompilerParams(
            dimension_semantics=("parallel",)),  # v7x: shard steps over both TCs
    )(x, w_t, bias2d)

    if B_pad != B:
        out = out[:B]
    return out


def init_params(key):
    """Deterministic init matching PyTorch Linear's shapes:
    weight (26, 42), bias (26,), uniform(-1/sqrt(42), 1/sqrt(42))."""
    kw, kb = jax.random.split(key)
    bound = 1.0 / (IN_FEATURES ** 0.5)
    weight = jax.random.uniform(
        kw, (OUT_FEATURES, IN_FEATURES), jnp.float32, -bound, bound)
    bias = jax.random.uniform(
        kb, (OUT_FEATURES,), jnp.float32, -bound, bound)
    return weight, bias


if __name__ == "__main__":
    key = jax.random.PRNGKey(0)
    k_params, k_x = jax.random.split(key)

    weight, bias = init_params(k_params)         # (26, 42), (26,)
    w_t = weight.T                               # (42, 26) so kernel does x @ W^T

    # Small demo batch (single pad-free grid step, TB == B == 8).
    batch = 8
    x = jax.random.normal(k_x, (batch, IN_FEATURES), jnp.float32)
    out = jax.block_until_ready(sign_language_model_forward(x, w_t, bias))
    ref = x @ w_t + bias
    assert out.shape == (batch, OUT_FEATURES)
    assert jnp.allclose(out, ref, atol=1e-5, rtol=1e-5)

    # Gridded + padded path: batch not a multiple of the tile, multi-step grid.
    batch2 = 200
    x2 = jax.random.normal(
        jax.random.PRNGKey(1), (batch2, IN_FEATURES), jnp.float32)
    out2 = jax.block_until_ready(
        sign_language_model_forward(x2, w_t, bias, tb=64))
    ref2 = x2 @ w_t + bias
    assert out2.shape == (batch2, OUT_FEATURES)
    assert jnp.allclose(out2, ref2, atol=1e-5, rtol=1e-5)

    # bf16-input path (caller already holds bf16 activations; f32 accumulation).
    x2_bf16 = x2.astype(jnp.bfloat16)
    out3 = jax.block_until_ready(
        sign_language_model_forward(x2_bf16, w_t, bias, tb=64))
    assert out3.dtype == jnp.bfloat16
    assert jnp.allclose(out3.astype(jnp.float32), ref2, atol=5e-2, rtol=5e-2)

    print("KERNEL_OK")
</pallas_src>

<mosaic_0001>
module attributes {stable_mosaic.version = 11 : i64} {
  func.func @_linear_kernel(%arg0: i32, %arg1: memref<8x42xf32, #tpu.memory_space<vmem>>, %arg2: memref<42x26xf32, #tpu.memory_space<vmem>>, %arg3: memref<1x26xf32, #tpu.memory_space<vmem>>, %arg4: memref<8x26xf32, #tpu.memory_space<vmem>>) attributes {dimension_semantics = [#tpu.dimension_semantics<parallel>], iteration_bounds = array<i64: 1>, scalar_prefetch = 0 : i64, scratch_operands = 0 : i64, tpu.core_type = #tpu.core_type<tc>, window_params = [{transform_indices = @transform_0, window_bounds = array<i64: 8, 42>}, {pipeline_mode = #tpu.pipeline_mode<synchronous>, transform_indices = @transform_1, window_bounds = array<i64: 42, 26>}, {pipeline_mode = #tpu.pipeline_mode<synchronous>, transform_indices = @transform_2, window_bounds = array<i64: 1, 26>}, {transform_indices = @transform_3, window_bounds = array<i64: 8, 26>}]} {
    %c0 = arith.constant 0 : index
    %c0_0 = arith.constant 0 : index
    %0 = vector.load %arg1[%c0, %c0_0] : memref<8x42xf32, #tpu.memory_space<vmem>>, vector<8x42xf32>
    %c0_1 = arith.constant 0 : index
    %c0_2 = arith.constant 0 : index
    %1 = vector.load %arg2[%c0_1, %c0_2] : memref<42x26xf32, #tpu.memory_space<vmem>>, vector<42x26xf32>
    %c0_3 = arith.constant 0 : index
    %c0_4 = arith.constant 0 : index
    %2 = vector.load %arg3[%c0_3, %c0_4] : memref<1x26xf32, #tpu.memory_space<vmem>>, vector<1x26xf32>
    %cst = arith.constant dense<0.000000e+00> : vector<8x26xf32>
    %3 = tpu.matmul %0, %1, %cst {dimension_numbers = #tpu.dot_dimension_numbers<[1], [0], [0], [1], [0, 0, 1, 1], [], []>} : vector<8x42xf32>, vector<42x26xf32>, vector<8x26xf32> -> vector<8x26xf32>
    %4 = vector.broadcast %2 : vector<1x26xf32> to vector<8x26xf32>
    %5 = arith.addf %3, %4 : vector<8x26xf32>
    %c0_5 = arith.constant 0 : index
    %c0_6 = arith.constant 0 : index
    %6 = vector.load %arg4[%c0_5, %c0_6] : memref<8x26xf32, #tpu.memory_space<vmem>>, vector<8x26xf32>
    tpu.vector_store %arg4[%c0_5, %c0_6], %5 {strides = array<i32>} : memref<8x26xf32, #tpu.memory_space<vmem>>, vector<8x26xf32>,
    return
  }
  func.func @transform_0(%arg0: i32) -> (i32, i32) {
    %c0_i32 = arith.constant 0 : i32
    %c0_i32_0 = arith.constant 0 : i32
    return %arg0, %c0_i32 : i32, i32
  }
  func.func @transform_1(%arg0: i32) -> (i32, i32) {
    %c0_i32 = arith.constant 0 : i32
    %c0_i32_0 = arith.constant 0 : i32
    %c0_i32_1 = arith.constant 0 : i32
    return %c0_i32, %c0_i32_0 : i32, i32
  }
  func.func @transform_2(%arg0: i32) -> (i32, i32) {
    %c0_i32 = arith.constant 0 : i32
    %c0_i32_0 = arith.constant 0 : i32
    %c0_i32_1 = arith.constant 0 : i32
    return %c0_i32, %c0_i32_0 : i32, i32
  }
  func.func @transform_3(%arg0: i32) -> (i32, i32) {
    %c0_i32 = arith.constant 0 : i32
    %c0_i32_0 = arith.constant 0 : i32
    return %arg0, %c0_i32 : i32, i32
  }
}

</mosaic_0001>

<llo_original>
// kernel: tpu_custom_call.1
$region0: #{tpu_custom_call.1}
  #allocation0 [shape = 'u32[]', space=smem, size = 0x4, offset = 0x4, fixed_abs, tag = 'smem constant byte address 0x4 - core index']
  #allocation1 [shape = 'u32[144,128]{1,0:T(1,128)}', space=vmem, size = 0x12000, scoped, tag = 'internal scratch']
  %s0 = inlined_call_operand.vmem [shape: f32[8,42], index: 0, kind: input, shape index: {}]
  %s1 = inlined_call_operand.vmem [shape: f32[42,26], index: 1, kind: input, shape index: {}]
  %s2 = inlined_call_operand.vmem [shape: f32[1,26], index: 2, kind: input, shape index: {}]
  %s3 = inlined_call_operand.hbm [shape: f32[8,26], index: 3, kind: output, shape index: {}]
  %s4 = sld [smem:[#allocation0]]
  $region22: #{tpu_custom_call.1} parent=0
    _
  %s6 = ssub.s32 1, %s4
  %s7 = scalar_select 0, %s6, %s4
  $region1: #{tpu_custom_call.1} parent=0
    #allocation2 [shape = 'u8[4096]{0}', space=vmem, size = 0x1000, scoped, tag = 'output window, operand 0, single buffered']
    #allocation3 [shape = 's32[1]{0}', space=sflag, size = 0x4, scoped, tag = 'scoped memory for tpu_custom_call.1']
    %8 = vsyncpa [#allocation3], 0
    // Predicated region
    $region2: #{tpu_custom_call.1} parent=1 // pred_check
      _
    $region3: #{tpu_custom_call.1} parent=1 // pred_check_branch
      %10 = sbr.rel (0) target = $region5
    $region4: #{tpu_custom_call.1} parent=1 // pred_region
      _
    $region5: #{tpu_custom_call.1} parent=1 // pred_fallthru
      _
    // Predicated region
    $region6: #{tpu_custom_call.1} parent=1 // pred_check
      _
    $region7: #{tpu_custom_call.1} parent=1 // pred_check_branch
      %12 = sbr.rel (0) target = $region9
    $region8: #{tpu_custom_call.1} parent=1 // pred_region
      _
    $region9: #{tpu_custom_call.1} parent=1 // pred_fallthru
      _
    // Predicated region
    $region10: #{tpu_custom_call.1} parent=1 // pred_check
      _
    $region11: #{tpu_custom_call.1} parent=1 // pred_check_branch
      %14 = sbr.rel (0) target = $region13
    $region12: #{tpu_custom_call.1} parent=1 // pred_region
      _
    $region13: #{tpu_custom_call.1} parent=1 // pred_fallthru
      _
    %v15 = vld [vmem:[%s0] sm:$0xff]
    %v16 = vld [vmem:[%s1] sm:$0xff]
    %v17 = vld [vmem:[%s1 + $0x8] sm:$0xff]
    %v18 = vld [vmem:[%s1 + $0x10] sm:$0xff]
    %v19 = vld [vmem:[%s1 + $0x18] sm:$0xff]
    %v20 = vld [vmem:[%s1 + $0x20] sm:$0xff]
    %v21 = vld [vmem:[%s1 + $0x28] sm:$0x3]
    %v22 = vld [vmem:[%s2] sm:$0x1]
    %v24 = vlaneseq
    %v25 = vshrl.u32 %v24, 7
    %v26 = vsub.s32 0, %v25
    %v27 = vrot.slane %v22, %v26
    %vm29 = vcmask 343040
    %v31 = vsel %vm29, %v15, 0
    %vm33 = vcmask 1041408
    %v35 = vsel %vm33, %v21, 0
    %37 = vmatprep.subr.mxu0 0.0
    %38 = vmatpush1.msra.mxu0 %v16
    %39 = vmatprep.subr.mxu0 0.0
    %40 = vmatpush1.msra.mxu0 %v17
    %41 = vmatprep.subr.mxu0 0.0
    %42 = vmatpush1.msra.mxu0 %v18
    %43 = vmatprep.subr.mxu0 0.0
    %44 = vmatpush1.msra.mxu0 %v19
    %45 = vmatprep.subr.mxu0 0.0
    %46 = vmatpush1.msra.mxu0 %v20
    %47 = vmatprep.subr.mxu0 0.0
    %48 = vmatpush1.msra.mxu0 %v35
    %49 = vmatprep.subr.mxu0 0.0
    %50 = vmatpush1.msra.mxu0 0.0
    %51 = vmatprep.subr.mxu0 0.0
    %52 = vmatpush1.msra.mxu0 0.0
    %53 = vmatprep.subr.mxu0 0.0
    %54 = vmatpush1.msra.mxu0 0.0
    %55 = vmatprep.subr.mxu0 0.0
    %56 = vmatpush1.msra.mxu0 0.0
    %57 = vmatprep.subr.mxu0 0.0
    %58 = vmatpush1.msra.mxu0 0.0
    %59 = vmatprep.subr.mxu0 0.0
    %60 = vmatpush1.msra.mxu0 0.0
    %61 = vmatprep.subr.mxu0 0.0
    %62 = vmatpush1.msra.mxu0 0.0
    %63 = vmatprep.subr.mxu0 0.0
    %64 = vmatpush1.msra.mxu0 0.0
    %65 = vmatprep.subr.mxu0 0.0
    %66 = vmatpush1.msra.mxu0 0.0
    %67 = vmatprep.subr.mxu0 0.0
    %68 = vmatpush1.msra.mxu0 0.0
    %69 = vmatprep.subr.mxu0 0.0
    %70 = vmatpush1.msra.mxu0 0.0
    %71 = vmatprep.subr.mxu0 0.0
    %72 = vmatpush1.msra.mxu0 0.0
    %73 = vmatprep.subr.mxu0 0.0
    %74 = vmatpush1.msra.mxu0 0.0
    %75 = vmatprep.subr.mxu0 0.0
    %76 = vmatpush1.msra.mxu0 0.0
    %77 = vmatprep.subr.mxu0 0.0
    %78 = vmatpush1.msra.mxu0 0.0
    %79 = vmatprep.subr.mxu0 0.0
    %80 = vmatpush1.msra.mxu0 0.0
    %81 = vmatprep.subr.mxu0 0.0
    %82 = vmatpush1.msra.mxu0 0.0
    %83 = vmatprep.subr.mxu0 0.0
    %84 = vmatpush1.msra.mxu0 0.0
    %85 = vmatprep.subr.mxu0 0.0
    %86 = vmatpush1.msra.mxu0 0.0
    %87 = vmatprep.subr.mxu0 0.0
    %88 = vmatpush1.msra.mxu0 0.0
    %89 = vmatprep.subr.mxu0 0.0
    %90 = vmatpush1.msra.mxu0 0.0
    %91 = vmatprep.subr.mxu0 0.0
    %92 = vmatpush1.msra.mxu0 0.0
    %93 = vmatprep.subr.mxu0 0.0
    %94 = vmatpush1.msra.mxu0 0.0
    %95 = vmatprep.subr.mxu0 0.0
    %96 = vmatpush1.msra.mxu0 0.0
    %97 = vmatprep.subr.mxu0 0.0
    %98 = vmatpush1.msra.mxu0 0.0
    %99 = vmatprep.subr.mxu0 0.0
    %100 = vmatpush1.msra.mxu0 0.0
    %101 = vmatprep.mubr.f32.mxu0 0.0
    %102 = vmatmul.mubr.f32.gmra.mrb[0].mxu0 %v31
    %v103 = vpop.f32.mrb[0].mxu0
    %v104 = vadd.f32 %v27, %v103
    %v105 = vpop.f32.mrb[0].mxu0
    %106 = vdwg.mxu0
    %vm107 = vcmask 211968
    %108 = vst.msk [vmem:[#allocation2] sm:$0xff] %vm107, %v104
    // Predicated region
    $region14: #{tpu_custom_call.1} parent=1 // pred_check
      _
    $region15: #{tpu_custom_call.1} parent=1 // pred_check_branch
      %110 = sbr.rel (0) target = $region17
    $region16: #{tpu_custom_call.1} parent=1 // pred_region
      %s112 = ssub.s32 128, 128
      %113 = vsyncadd [#allocation3], %s112
      %s115 = sshll.u32 [#allocation2], 4
      %s116 = int_to_ptr.vmem [resolvable:$true] %s115
      %118 = dma.vmem_to_hbm [thread:$0]  %s116, 128, %s3, [#allocation3]
    $region17: #{tpu_custom_call.1} parent=1 // pred_fallthru
      _
    // Predicated region
    $region18: #{tpu_custom_call.1} parent=1 // pred_check
      _
    $region19: #{tpu_custom_call.1} parent=1 // pred_check_branch
      %120 = sbr.rel (0) target = $region21
    $region20: #{tpu_custom_call.1} parent=1 // pred_region
      %121 = dma.done [#allocation3], 128
    $region21: #{tpu_custom_call.1} parent=1 // pred_fallthru
      _
    %122 = vsyncpa [#allocation3], 1

</llo_original>
